<compile_context>
chip_gen: v5e
topology: v5e:2x2
jax: 0.10.0
libtpu: 0.0.40
codegen_flags: <defaults>
</compile_context>

<pallas_src>
import functools

import jax
import jax.numpy as jnp
from jax.experimental import pallas as pl
from jax.experimental.pallas import tpu as pltpu

EPS = 1e-5


def _round_up(x, m):
    return ((x + m - 1) // m) * m


def decoder_kernel(x_ref, v_ref, w14_hbm, w5_hbm, w6_hbm, out_ref,
                   wbuf14, wbuf5, wbuf6, sems):
    """x_ref: [B, D1] f32 (VMEM); v_ref: [11, VMAX] f32 (VMEM);
    w14_hbm: [4, D1, D1] bf16 (HBM); w5_hbm: [D1, D5] bf16; w6_hbm: [D5, D6] bf16;
    out_ref: [B, D6] f32; wbuf14: [2, D1, D1] bf16 VMEM scratch; sems: DMA((4,)).

    v_ref rows: 0..4 = gamma (BN layers 1..5), 5..9 = beta, 10 = final bias.
    """
    n14 = w14_hbm.shape[0]          # 4 small layers
    d1 = wbuf14.shape[2]
    d5 = wbuf5.shape[1]
    d6 = wbuf6.shape[1]

    def w14_copy(layer, slot):
        return pltpu.make_async_copy(w14_hbm.at[layer], wbuf14.at[slot],
                                     sems.at[slot])

    cp5 = pltpu.make_async_copy(w5_hbm, wbuf5, sems.at[2])
    cp6 = pltpu.make_async_copy(w6_hbm, wbuf6, sems.at[3])

    # Prime: layer-0 weights plus the two large tail weights.  The tail copies
    # land while layers 0..3 compute, so only the 32 KiB layer-0 tile is on the
    # critical path before the first matmul.
    w14_copy(0, 0).start()
    cp5.start()
    cp6.start()

    inv_b = jnp.float32(1.0 / x_ref.shape[0])

    def bn_relu(y, layer, width):
        # Training-mode BatchNorm1d + ReLU, centered two-pass biased variance.
        gamma = v_ref[layer:layer + 1, :width]
        beta = v_ref[5 + layer:6 + layer, :width]
        mu = jnp.sum(y, axis=0, keepdims=True) * inv_b
        d = y - mu
        var = jnp.sum(d * d, axis=0, keepdims=True) * inv_b
        scale = gamma * jax.lax.rsqrt(var + jnp.float32(EPS))
        return jnp.maximum(d * scale + beta, 0.0)

    h = x_ref[...]                                              # [B, D1] f32

    # Layers 1..4: double-buffered [D1, D1] weights.
    for l in range(n14):
        slot = l & 1
        if l + 1 < n14:
            w14_copy(l + 1, 1 - slot).start()                   # prefetch next
        w14_copy(l, slot).wait()
        w = wbuf14[slot].astype(jnp.float32)
        y = jnp.dot(h, w, preferred_element_type=jnp.float32)   # [B, D1]
        h = bn_relu(y, l, d1)

    # Layer 5: D1 -> 256, BN, ReLU.
    cp5.wait()
    y = jnp.dot(h, wbuf5[...].astype(jnp.float32),
                preferred_element_type=jnp.float32)             # [B, D5]
    h = bn_relu(y, 4, d5)

    # Final Linear (bias kept — no BN after it).
    cp6.wait()
    y = jnp.dot(h, wbuf6[...].astype(jnp.float32),
                preferred_element_type=jnp.float32)             # [B, D6]
    out_ref[...] = y + v_ref[10:11, :d6]


def init_decoder_params(key, inp_dim, out_dim, hidden_dim, z_dim):
    """Synthetic parameters matching the PyTorch module's shapes.

    Linear weights are stored transposed (in_features, out_features) so the
    kernel / reference can do h @ W directly.  Layout of the returned list:
    [w, b, gamma, beta] * 5  +  [w6, b6].
    """
    dims = [z_dim + inp_dim, hidden_dim, hidden_dim, hidden_dim, hidden_dim,
            256, out_dim]
    params = []
    keys = jax.random.split(key, len(dims) - 1)
    for li in range(len(dims) - 1):
        fan_in, fan_out = dims[li], dims[li + 1]
        kw, kb, kg, kbeta = jax.random.split(keys[li], 4)
        bound = float(fan_in) ** -0.5
        w = jax.random.uniform(kw, (fan_in, fan_out), jnp.float32,
                               minval=-bound, maxval=bound)
        b = jax.random.uniform(kb, (1, fan_out), jnp.float32,
                               minval=-bound, maxval=bound)
        params.append(w)
        params.append(b)
        if li < len(dims) - 2:  # BN after every layer except the last
            gamma = 1.0 + 0.1 * jax.random.normal(kg, (1, fan_out), jnp.float32)
            beta = 0.1 * jax.random.normal(kbeta, (1, fan_out), jnp.float32)
            params.append(gamma)
            params.append(beta)
    return params


def pack_decoder_params(params, inp_dim, out_dim, hidden_dim, z_dim):
    """Pack parameters into right-sized, lane-padded bf16 weight slabs.

    Returns:
      w14:    [4, D1, D1] bf16 — layers 1..4 (biases dropped: cancel under BN)
      w5:     [D1, D5] bf16
      w6:     [D5, D6] bf16
      v_slab: [11, VMAX] f32 — rows 0..4 gamma, 5..9 beta, 10 final bias.
    """
    d_in = z_dim + inp_dim
    D1 = _round_up(max(d_in, hidden_dim), 128)
    D5 = _round_up(256, 128)
    D6 = _round_up(out_dim, 128)
    VMAX = max(D1, D5, D6)

    w14 = jnp.zeros((4, D1, D1), jnp.float32)
    w5p = jnp.zeros((D1, D5), jnp.float32)
    w6p = jnp.zeros((D5, D6), jnp.float32)
    v = jnp.zeros((11, VMAX), jnp.float32)

    idx = 0
    for l in range(5):
        w, _b, g, beta = params[idx], params[idx + 1], params[idx + 2], params[idx + 3]
        idx += 4
        fi, fo = w.shape
        if l < 4:
            w14 = w14.at[l, :fi, :fo].set(w)
        else:
            w5p = w5p.at[:fi, :fo].set(w)
        v = v.at[l, :fo].set(g[0])
        v = v.at[5 + l, :fo].set(beta[0])
    w6, b6 = params[idx], params[idx + 1]
    fi, fo = w6.shape
    w6p = w6p.at[:fi, :fo].set(w6)
    v = v.at[10, :fo].set(b6[0])
    return (w14.astype(jnp.bfloat16), w5p.astype(jnp.bfloat16),
            w6p.astype(jnp.bfloat16), v)


@functools.partial(jax.jit, static_argnames=("out_dim",))
def decoder_forward(x, w14, w5, w6, v_slab, out_dim):
    batch, in_dim = x.shape
    if batch < 2:
        raise ValueError("training-mode BatchNorm needs batch >= 2")
    D1 = w14.shape[1]
    D5 = w5.shape[1]
    D6 = w6.shape[1]
    VMAX = v_slab.shape[1]

    # Zero-pad the input feature dim to the lane-dense width (batch NOT padded:
    # BN statistics use the exact batch size).
    xp = jnp.zeros((batch, D1), jnp.float32).at[:, :in_dim].set(
        x.astype(jnp.float32))

    # --- Cost / VMEM accounting from actual buffer sizes -------------------
    hbm_weight_bytes = (4 * D1 * D1 + D1 * D5 + D5 * D6) * 2        # bf16
    bytes_accessed = (hbm_weight_bytes
                      + (batch * D1 + batch * D6 + 11 * VMAX) * 4)  # f32 io
    flops = 2 * batch * (4 * D1 * D1 + D1 * D5 + D5 * D6)
    transcendentals = 4 * D1 + D5                                   # one rsqrt/feature
    scratch_bytes = (2 * D1 * D1 + D1 * D5 + D5 * D6) * 2           # bf16 scratch
    io_bytes = (batch * D1 + 11 * VMAX + batch * D6) * 4
    vmem_limit = scratch_bytes + io_bytes + (4 << 20)               # + headroom

    vmem_spec = pl.BlockSpec(memory_space=pltpu.MemorySpace.VMEM)
    hbm_spec = pl.BlockSpec(memory_space=pl.ANY)

    out_padded = pl.pallas_call(
        decoder_kernel,
        out_shape=jax.ShapeDtypeStruct((batch, D6), jnp.float32),
        in_specs=[vmem_spec, vmem_spec, hbm_spec, hbm_spec, hbm_spec],
        out_specs=vmem_spec,
        scratch_shapes=[
            pltpu.VMEM((2, D1, D1), jnp.bfloat16),   # double-buffered layer 1-4 weights
            pltpu.VMEM((D1, D5), jnp.bfloat16),
            pltpu.VMEM((D5, D6), jnp.bfloat16),
            pltpu.SemaphoreType.DMA((4,)),
        ],
        compiler_params=pltpu.CompilerParams(vmem_limit_bytes=vmem_limit),
        cost_estimate=pl.CostEstimate(flops=flops,
                                      transcendentals=transcendentals,
                                      bytes_accessed=bytes_accessed),
    )(xp, v_slab, w14, w5, w6)
    return out_padded[:, :out_dim]


def decoder_reference(x, params, weight_dtype=jnp.float32):
    """Plain-JAX reference mirroring the PyTorch module (Linear biases kept,
    training-mode BN).  `weight_dtype` round-trips weights through the kernel's
    storage dtype so the comparison isolates kernel numerics."""
    h = x
    idx = 0
    for _ in range(5):
        w, b, g, beta = params[idx], params[idx + 1], params[idx + 2], params[idx + 3]
        idx += 4
        w = w.astype(weight_dtype).astype(jnp.float32)
        y = h @ w + b
        mu = jnp.mean(y, axis=0, keepdims=True)
        var = jnp.mean((y - mu) ** 2, axis=0, keepdims=True)
        h = jnp.maximum((y - mu) / jnp.sqrt(var + EPS) * g + beta, 0.0)
    w = params[idx].astype(weight_dtype).astype(jnp.float32)
    return h @ w + params[idx + 1]


if __name__ == "__main__":
    # Small, module-consistent shapes.
    batch, inp_dim, z_dim, hidden_dim, out_dim = 8, 16, 16, 32, 16

    key = jax.random.PRNGKey(0)
    kx, kp = jax.random.split(key)
    x = jax.random.normal(kx, (batch, z_dim + inp_dim), jnp.float32)
    params = init_decoder_params(kp, inp_dim, out_dim, hidden_dim, z_dim)

    # Pack once (parameters are static across calls).
    w14, w5, w6, v_slab = pack_decoder_params(params, inp_dim, out_dim,
                                              hidden_dim, z_dim)

    out = decoder_forward(x, w14, w5, w6, v_slab, out_dim)
    out = jax.block_until_ready(out)

    # Reference uses the same bf16-quantized weights (f32 accumulation).
    ref = decoder_reference(x, params, weight_dtype=jnp.bfloat16)
    assert out.shape == (batch, out_dim)
    assert jnp.allclose(out, ref, atol=1e-4, rtol=1e-4), "mismatch vs reference"

    print("KERNEL_OK")
</pallas_src>

<mosaic_0001>
module attributes {stable_mosaic.version = 11 : i64} {
  func.func @decoder_kernel(%arg0: memref<8x128xf32, #tpu.memory_space<vmem>>, %arg1: memref<11x256xf32, #tpu.memory_space<vmem>>, %arg2: memref<4x128x128xbf16, #tpu.memory_space<any>>, %arg3: memref<128x256xbf16, #tpu.memory_space<any>>, %arg4: memref<256x128xbf16, #tpu.memory_space<any>>, %arg5: memref<8x128xf32, #tpu.memory_space<vmem>>, %arg6: memref<2x128x128xbf16, #tpu.memory_space<vmem>>, %arg7: memref<128x256xbf16, #tpu.memory_space<vmem>>, %arg8: memref<256x128xbf16, #tpu.memory_space<vmem>>, %arg9: memref<4x!tpu.dma_semaphore, #tpu.memory_space<semaphore_mem>>) attributes {dimension_semantics = [], scalar_prefetch = 0 : i64, scratch_operands = 4 : i64, tpu.core_type = #tpu.core_type<tc>} {
    %c0_i32 = arith.constant 0 : i32
    %c0_i32_0 = arith.constant 0 : i32
    %c0_i32_1 = arith.constant 0 : i32
    %c0_i32_2 = arith.constant 0 : i32
    %c0_i32_3 = arith.constant 0 : i32
    %0 = tpu.memref_slice %arg2[%c0_i32, %c0_i32_2, %c0_i32_3] : memref<4x128x128xbf16, #tpu.memory_space<any>> -> memref<1x128x128xbf16, #tpu.memory_space<any>>
    %1 = tpu.memref_squeeze %0 : memref<1x128x128xbf16, #tpu.memory_space<any>> -> memref<128x128xbf16, #tpu.memory_space<any>>
    %c0_i32_4 = arith.constant 0 : i32
    %c0_i32_5 = arith.constant 0 : i32
    %2 = tpu.memref_slice %arg6[%c0_i32_0, %c0_i32_4, %c0_i32_5] : memref<2x128x128xbf16, #tpu.memory_space<vmem>> -> memref<1x128x128xbf16, #tpu.memory_space<vmem>>
    %3 = tpu.memref_squeeze %2 : memref<1x128x128xbf16, #tpu.memory_space<vmem>> -> memref<128x128xbf16, #tpu.memory_space<vmem>>
    %4 = tpu.memref_slice %arg9[%c0_i32_1] : memref<4x!tpu.dma_semaphore, #tpu.memory_space<semaphore_mem>> -> memref<1x!tpu.dma_semaphore, #tpu.memory_space<semaphore_mem>>
    %5 = tpu.memref_squeeze %4 : memref<1x!tpu.dma_semaphore, #tpu.memory_space<semaphore_mem>> -> memref<!tpu.dma_semaphore, #tpu.memory_space<semaphore_mem>>
    tpu.enqueue_dma source(%1 : memref<128x128xbf16, #tpu.memory_space<any>>) target(%3 : memref<128x128xbf16, #tpu.memory_space<vmem>>) target_semaphore(%5 : memref<!tpu.dma_semaphore, #tpu.memory_space<semaphore_mem>>)
    %c2_i32 = arith.constant 2 : i32
    %6 = tpu.memref_slice %arg9[%c2_i32] : memref<4x!tpu.dma_semaphore, #tpu.memory_space<semaphore_mem>> -> memref<1x!tpu.dma_semaphore, #tpu.memory_space<semaphore_mem>>
    %7 = tpu.memref_squeeze %6 : memref<1x!tpu.dma_semaphore, #tpu.memory_space<semaphore_mem>> -> memref<!tpu.dma_semaphore, #tpu.memory_space<semaphore_mem>>
    tpu.enqueue_dma source(%arg3 : memref<128x256xbf16, #tpu.memory_space<any>>) target(%arg7 : memref<128x256xbf16, #tpu.memory_space<vmem>>) target_semaphore(%7 : memref<!tpu.dma_semaphore, #tpu.memory_space<semaphore_mem>>)
    %c3_i32 = arith.constant 3 : i32
    %8 = tpu.memref_slice %arg9[%c3_i32] : memref<4x!tpu.dma_semaphore, #tpu.memory_space<semaphore_mem>> -> memref<1x!tpu.dma_semaphore, #tpu.memory_space<semaphore_mem>>
    %9 = tpu.memref_squeeze %8 : memref<1x!tpu.dma_semaphore, #tpu.memory_space<semaphore_mem>> -> memref<!tpu.dma_semaphore, #tpu.memory_space<semaphore_mem>>
    tpu.enqueue_dma source(%arg4 : memref<256x128xbf16, #tpu.memory_space<any>>) target(%arg8 : memref<256x128xbf16, #tpu.memory_space<vmem>>) target_semaphore(%9 : memref<!tpu.dma_semaphore, #tpu.memory_space<semaphore_mem>>)
    %c0 = arith.constant 0 : index
    %c0_6 = arith.constant 0 : index
    %10 = vector.load %arg0[%c0, %c0_6] : memref<8x128xf32, #tpu.memory_space<vmem>>, vector<8x128xf32>
    %c1_i32 = arith.constant 1 : i32
    %c1_i32_7 = arith.constant 1 : i32
    %c1_i32_8 = arith.constant 1 : i32
    %c0_i32_9 = arith.constant 0 : i32
    %c0_i32_10 = arith.constant 0 : i32
    %11 = tpu.memref_slice %arg2[%c1_i32, %c0_i32_9, %c0_i32_10] : memref<4x128x128xbf16, #tpu.memory_space<any>> -> memref<1x128x128xbf16, #tpu.memory_space<any>>
    %12 = tpu.memref_squeeze %11 : memref<1x128x128xbf16, #tpu.memory_space<any>> -> memref<128x128xbf16, #tpu.memory_space<any>>
    %c0_i32_11 = arith.constant 0 : i32
    %c0_i32_12 = arith.constant 0 : i32
    %13 = tpu.memref_slice %arg6[%c1_i32_7, %c0_i32_11, %c0_i32_12] : memref<2x128x128xbf16, #tpu.memory_space<vmem>> -> memref<1x128x128xbf16, #tpu.memory_space<vmem>>
    %14 = tpu.memref_squeeze %13 : memref<1x128x128xbf16, #tpu.memory_space<vmem>> -> memref<128x128xbf16, #tpu.memory_space<vmem>>
    %15 = tpu.memref_slice %arg9[%c1_i32_8] : memref<4x!tpu.dma_semaphore, #tpu.memory_space<semaphore_mem>> -> memref<1x!tpu.dma_semaphore, #tpu.memory_space<semaphore_mem>>
    %16 = tpu.memref_squeeze %15 : memref<1x!tpu.dma_semaphore, #tpu.memory_space<semaphore_mem>> -> memref<!tpu.dma_semaphore, #tpu.memory_space<semaphore_mem>>
    tpu.enqueue_dma source(%12 : memref<128x128xbf16, #tpu.memory_space<any>>) target(%14 : memref<128x128xbf16, #tpu.memory_space<vmem>>) target_semaphore(%16 : memref<!tpu.dma_semaphore, #tpu.memory_space<semaphore_mem>>)
    %c0_i32_13 = arith.constant 0 : i32
    %c0_i32_14 = arith.constant 0 : i32
    %c0_i32_15 = arith.constant 0 : i32
    %c0_i32_16 = arith.constant 0 : i32
    %c0_i32_17 = arith.constant 0 : i32
    %17 = tpu.memref_slice %arg2[%c0_i32_13, %c0_i32_16, %c0_i32_17] : memref<4x128x128xbf16, #tpu.memory_space<any>> -> memref<1x128x128xbf16, #tpu.memory_space<any>>
    %18 = tpu.memref_squeeze %17 : memref<1x128x128xbf16, #tpu.memory_space<any>> -> memref<128x128xbf16, #tpu.memory_space<any>>
    %c0_i32_18 = arith.constant 0 : i32
    %c0_i32_19 = arith.constant 0 : i32
    %19 = tpu.memref_slice %arg6[%c0_i32_14, %c0_i32_18, %c0_i32_19] : memref<2x128x128xbf16, #tpu.memory_space<vmem>> -> memref<1x128x128xbf16, #tpu.memory_space<vmem>>
    %20 = tpu.memref_squeeze %19 : memref<1x128x128xbf16, #tpu.memory_space<vmem>> -> memref<128x128xbf16, #tpu.memory_space<vmem>>
    %21 = tpu.memref_slice %arg9[%c0_i32_15] : memref<4x!tpu.dma_semaphore, #tpu.memory_space<semaphore_mem>> -> memref<1x!tpu.dma_semaphore, #tpu.memory_space<semaphore_mem>>
    %22 = tpu.memref_squeeze %21 : memref<1x!tpu.dma_semaphore, #tpu.memory_space<semaphore_mem>> -> memref<!tpu.dma_semaphore, #tpu.memory_space<semaphore_mem>>
    tpu.wait_dma2 semaphore(%22 : memref<!tpu.dma_semaphore, #tpu.memory_space<semaphore_mem>>) src(%18 : memref<128x128xbf16, #tpu.memory_space<any>>) dst(%20 : memref<128x128xbf16, #tpu.memory_space<vmem>>)
    %c0_20 = arith.constant 0 : index
    %c0_21 = arith.constant 0 : index
    %c0_22 = arith.constant 0 : index
    %23 = vector.load %arg6[%c0_20, %c0_21, %c0_22] : memref<2x128x128xbf16, #tpu.memory_space<vmem>>, vector<1x128x128xbf16>
    %24 = vector.shape_cast %23 : vector<1x128x128xbf16> to vector<128x128xbf16>
    %25 = arith.extf %24 : vector<128x128xbf16> to vector<128x128xf32>
    %cst = arith.constant dense<0.000000e+00> : vector<8x128xf32>
    %26 = tpu.matmul %10, %25, %cst {dimension_numbers = #tpu.dot_dimension_numbers<[1], [0], [0], [1], [0, 0, 1, 1], [], []>} : vector<8x128xf32>, vector<128x128xf32>, vector<8x128xf32> -> vector<8x128xf32>
    %c0_23 = arith.constant 0 : index
    %c0_24 = arith.constant 0 : index
    %27 = vector.load %arg1[%c0_23, %c0_24] : memref<11x256xf32, #tpu.memory_space<vmem>>, vector<1x128xf32>
    %c5 = arith.constant 5 : index
    %c0_25 = arith.constant 0 : index
    %28 = vector.load %arg1[%c5, %c0_25] : memref<11x256xf32, #tpu.memory_space<vmem>>, vector<1x128xf32>
    %cst_26 = arith.constant dense<0.000000e+00> : vector<128xf32>
    %29 = vector.multi_reduction <add>, %26, %cst_26 [0] : vector<8x128xf32> to vector<128xf32>
    %30 = vector.shape_cast %29 : vector<128xf32> to vector<1x128xf32>
    %cst_27 = arith.constant 1.250000e-01 : f32
    %31 = vector.broadcast %cst_27 : f32 to vector<1x128xf32>
    %32 = arith.mulf %30, %31 : vector<1x128xf32>
    %33 = vector.broadcast %32 : vector<1x128xf32> to vector<8x128xf32>
    %34 = arith.subf %26, %33 : vector<8x128xf32>
    %35 = arith.mulf %34, %34 : vector<8x128xf32>
    %cst_28 = arith.constant dense<0.000000e+00> : vector<128xf32>
    %36 = vector.multi_reduction <add>, %35, %cst_28 [0] : vector<8x128xf32> to vector<128xf32>
    %37 = vector.shape_cast %36 : vector<128xf32> to vector<1x128xf32>
    %cst_29 = arith.constant 1.250000e-01 : f32
    %38 = vector.broadcast %cst_29 : f32 to vector<1x128xf32>
    %39 = arith.mulf %37, %38 : vector<1x128xf32>
    %cst_30 = arith.constant 9.99999974E-6 : f32
    %40 = vector.broadcast %cst_30 : f32 to vector<1x128xf32>
    %41 = arith.addf %39, %40 : vector<1x128xf32>
    %42 = math.rsqrt %41 : vector<1x128xf32>
    %43 = arith.mulf %27, %42 : vector<1x128xf32>
    %44 = vector.broadcast %43 : vector<1x128xf32> to vector<8x128xf32>
    %45 = arith.mulf %34, %44 : vector<8x128xf32>
    %46 = vector.broadcast %28 : vector<1x128xf32> to vector<8x128xf32>
    %47 = arith.addf %45, %46 : vector<8x128xf32>
    %cst_31 = arith.constant 0.000000e+00 : f32
    %48 = vector.broadcast %cst_31 : f32 to vector<8x128xf32>
    %49 = arith.maximumf %47, %48 : vector<8x128xf32>
    %c2_i32_32 = arith.constant 2 : i32
    %c0_i32_33 = arith.constant 0 : i32
    %c0_i32_34 = arith.constant 0 : i32
    %c0_i32_35 = arith.constant 0 : i32
    %c0_i32_36 = arith.constant 0 : i32
    %50 = tpu.memref_slice %arg2[%c2_i32_32, %c0_i32_35, %c0_i32_36] : memref<4x128x128xbf16, #tpu.memory_space<any>> -> memref<1x128x128xbf16, #tpu.memory_space<any>>
    %51 = tpu.memref_squeeze %50 : memref<1x128x128xbf16, #tpu.memory_space<any>> -> memref<128x128xbf16, #tpu.memory_space<any>>
    %c0_i32_37 = arith.constant 0 : i32
    %c0_i32_38 = arith.constant 0 : i32
    %52 = tpu.memref_slice %arg6[%c0_i32_33, %c0_i32_37, %c0_i32_38] : memref<2x128x128xbf16, #tpu.memory_space<vmem>> -> memref<1x128x128xbf16, #tpu.memory_space<vmem>>
    %53 = tpu.memref_squeeze %52 : memref<1x128x128xbf16, #tpu.memory_space<vmem>> -> memref<128x128xbf16, #tpu.memory_space<vmem>>
    %54 = tpu.memref_slice %arg9[%c0_i32_34] : memref<4x!tpu.dma_semaphore, #tpu.memory_space<semaphore_mem>> -> memref<1x!tpu.dma_semaphore, #tpu.memory_space<semaphore_mem>>
    %55 = tpu.memref_squeeze %54 : memref<1x!tpu.dma_semaphore, #tpu.memory_space<semaphore_mem>> -> memref<!tpu.dma_semaphore, #tpu.memory_space<semaphore_mem>>
    tpu.enqueue_dma source(%51 : memref<128x128xbf16, #tpu.memory_space<any>>) target(%53 : memref<128x128xbf16, #tpu.memory_space<vmem>>) target_semaphore(%55 : memref<!tpu.dma_semaphore, #tpu.memory_space<semaphore_mem>>)
    %c1_i32_39 = arith.constant 1 : i32
    %c1_i32_40 = arith.constant 1 : i32
    %c1_i32_41 = arith.constant 1 : i32
    %c0_i32_42 = arith.constant 0 : i32
    %c0_i32_43 = arith.constant 0 : i32
    %56 = tpu.memref_slice %arg2[%c1_i32_39, %c0_i32_42, %c0_i32_43] : memref<4x128x128xbf16, #tpu.memory_space<any>> -> memref<1x128x128xbf16, #tpu.memory_space<any>>
    %57 = tpu.memref_squeeze %56 : memref<1x128x128xbf16, #tpu.memory_space<any>> -> memref<128x128xbf16, #tpu.memory_space<any>>
    %c0_i32_44 = arith.constant 0 : i32
    %c0_i32_45 = arith.constant 0 : i32
    %58 = tpu.memref_slice %arg6[%c1_i32_40, %c0_i32_44, %c0_i32_45] : memref<2x128x128xbf16, #tpu.memory_space<vmem>> -> memref<1x128x128xbf16, #tpu.memory_space<vmem>>
    %59 = tpu.memref_squeeze %58 : memref<1x128x128xbf16, #tpu.memory_space<vmem>> -> memref<128x128xbf16, #tpu.memory_space<vmem>>
    %60 = tpu.memref_slice %arg9[%c1_i32_41] : memref<4x!tpu.dma_semaphore, #tpu.memory_space<semaphore_mem>> -> memref<1x!tpu.dma_semaphore, #tpu.memory_space<semaphore_mem>>
    %61 = tpu.memref_squeeze %60 : memref<1x!tpu.dma_semaphore, #tpu.memory_space<semaphore_mem>> -> memref<!tpu.dma_semaphore, #tpu.memory_space<semaphore_mem>>
    tpu.wait_dma2 semaphore(%61 : memref<!tpu.dma_semaphore, #tpu.memory_space<semaphore_mem>>) src(%57 : memref<128x128xbf16, #tpu.memory_space<any>>) dst(%59 : memref<128x128xbf16, #tpu.memory_space<vmem>>)
    %c1 = arith.constant 1 : index
    %c0_46 = arith.constant 0 : index
    %c0_47 = arith.constant 0 : index
    %62 = vector.load %arg6[%c1, %c0_46, %c0_47] : memref<2x128x128xbf16, #tpu.memory_space<vmem>>, vector<1x128x128xbf16>
    %63 = vector.shape_cast %62 : vector<1x128x128xbf16> to vector<128x128xbf16>
    %64 = arith.extf %63 : vector<128x128xbf16> to vector<128x128xf32>
    %cst_48 = arith.constant dense<0.000000e+00> : vector<8x128xf32>
    %65 = tpu.matmul %49, %64, %cst_48 {dimension_numbers = #tpu.dot_dimension_numbers<[1], [0], [0], [1], [0, 0, 1, 1], [], []>} : vector<8x128xf32>, vector<128x128xf32>, vector<8x128xf32> -> vector<8x128xf32>
    %c1_49 = arith.constant 1 : index
    %c0_50 = arith.constant 0 : index
    %66 = vector.load %arg1[%c1_49, %c0_50] : memref<11x256xf32, #tpu.memory_space<vmem>>, vector<1x128xf32>
    %c6 = arith.constant 6 : index
    %c0_51 = arith.constant 0 : index
    %67 = vector.load %arg1[%c6, %c0_51] : memref<11x256xf32, #tpu.memory_space<vmem>>, vector<1x128xf32>
    %cst_52 = arith.constant dense<0.000000e+00> : vector<128xf32>
    %68 = vector.multi_reduction <add>, %65, %cst_52 [0] : vector<8x128xf32> to vector<128xf32>
    %69 = vector.shape_cast %68 : vector<128xf32> to vector<1x128xf32>
    %cst_53 = arith.constant 1.250000e-01 : f32
    %70 = vector.broadcast %cst_53 : f32 to vector<1x128xf32>
    %71 = arith.mulf %69, %70 : vector<1x128xf32>
    %72 = vector.broadcast %71 : vector<1x128xf32> to vector<8x128xf32>
    %73 = arith.subf %65, %72 : vector<8x128xf32>
    %74 = arith.mulf %73, %73 : vector<8x128xf32>
    %cst_54 = arith.constant dense<0.000000e+00> : vector<128xf32>
    %75 = vector.multi_reduction <add>, %74, %cst_54 [0] : vector<8x128xf32> to vector<128xf32>
    %76 = vector.shape_cast %75 : vector<128xf32> to vector<1x128xf32>
    %cst_55 = arith.constant 1.250000e-01 : f32
    %77 = vector.broadcast %cst_55 : f32 to vector<1x128xf32>
    %78 = arith.mulf %76, %77 : vector<1x128xf32>
    %cst_56 = arith.constant 9.99999974E-6 : f32
    %79 = vector.broadcast %cst_56 : f32 to vector<1x128xf32>
    %80 = arith.addf %78, %79 : vector<1x128xf32>
    %81 = math.rsqrt %80 : vector<1x128xf32>
    %82 = arith.mulf %66, %81 : vector<1x128xf32>
    %83 = vector.broadcast %82 : vector<1x128xf32> to vector<8x128xf32>
    %84 = arith.mulf %73, %83 : vector<8x128xf32>
    %85 = vector.broadcast %67 : vector<1x128xf32> to vector<8x128xf32>
    %86 = arith.addf %84, %85 : vector<8x128xf32>
    %cst_57 = arith.constant 0.000000e+00 : f32
    %87 = vector.broadcast %cst_57 : f32 to vector<8x128xf32>
    %88 = arith.maximumf %86, %87 : vector<8x128xf32>
    %c3_i32_58 = arith.constant 3 : i32
    %c1_i32_59 = arith.constant 1 : i32
    %c1_i32_60 = arith.constant 1 : i32
    %c0_i32_61 = arith.constant 0 : i32
    %c0_i32_62 = arith.constant 0 : i32
    %89 = tpu.memref_slice %arg2[%c3_i32_58, %c0_i32_61, %c0_i32_62] : memref<4x128x128xbf16, #tpu.memory_space<any>> -> memref<1x128x128xbf16, #tpu.memory_space<any>>
    %90 = tpu.memref_squeeze %89 : memref<1x128x128xbf16, #tpu.memory_space<any>> -> memref<128x128xbf16, #tpu.memory_space<any>>
    %c0_i32_63 = arith.constant 0 : i32
    %c0_i32_64 = arith.constant 0 : i32
    %91 = tpu.memref_slice %arg6[%c1_i32_59, %c0_i32_63, %c0_i32_64] : memref<2x128x128xbf16, #tpu.memory_space<vmem>> -> memref<1x128x128xbf16, #tpu.memory_space<vmem>>
    %92 = tpu.memref_squeeze %91 : memref<1x128x128xbf16, #tpu.memory_space<vmem>> -> memref<128x128xbf16, #tpu.memory_space<vmem>>
    %93 = tpu.memref_slice %arg9[%c1_i32_60] : memref<4x!tpu.dma_semaphore, #tpu.memory_space<semaphore_mem>> -> memref<1x!tpu.dma_semaphore, #tpu.memory_space<semaphore_mem>>
    %94 = tpu.memref_squeeze %93 : memref<1x!tpu.dma_semaphore, #tpu.memory_space<semaphore_mem>> -> memref<!tpu.dma_semaphore, #tpu.memory_space<semaphore_mem>>
    tpu.enqueue_dma source(%90 : memref<128x128xbf16, #tpu.memory_space<any>>) target(%92 : memref<128x128xbf16, #tpu.memory_space<vmem>>) target_semaphore(%94 : memref<!tpu.dma_semaphore, #tpu.memory_space<semaphore_mem>>)
    %c2_i32_65 = arith.constant 2 : i32
    %c0_i32_66 = arith.constant 0 : i32
    %c0_i32_67 = arith.constant 0 : i32
    %c0_i32_68 = arith.constant 0 : i32
    %c0_i32_69 = arith.constant 0 : i32
    %95 = tpu.memref_slice %arg2[%c2_i32_65, %c0_i32_68, %c0_i32_69] : memref<4x128x128xbf16, #tpu.memory_space<any>> -> memref<1x128x128xbf16, #tpu.memory_space<any>>
    %96 = tpu.memref_squeeze %95 : memref<1x128x128xbf16, #tpu.memory_space<any>> -> memref<128x128xbf16, #tpu.memory_space<any>>
    %c0_i32_70 = arith.constant 0 : i32
    %c0_i32_71 = arith.constant 0 : i32
    %97 = tpu.memref_slice %arg6[%c0_i32_66, %c0_i32_70, %c0_i32_71] : memref<2x128x128xbf16, #tpu.memory_space<vmem>> -> memref<1x128x128xbf16, #tpu.memory_space<vmem>>
    %98 = tpu.memref_squeeze %97 : memref<1x128x128xbf16, #tpu.memory_space<vmem>> -> memref<128x128xbf16, #tpu.memory_space<vmem>>
    %99 = tpu.memref_slice %arg9[%c0_i32_67] : memref<4x!tpu.dma_semaphore, #tpu.memory_space<semaphore_mem>> -> memref<1x!tpu.dma_semaphore, #tpu.memory_space<semaphore_mem>>
    %100 = tpu.memref_squeeze %99 : memref<1x!tpu.dma_semaphore, #tpu.memory_space<semaphore_mem>> -> memref<!tpu.dma_semaphore, #tpu.memory_space<semaphore_mem>>
    tpu.wait_dma2 semaphore(%100 : memref<!tpu.dma_semaphore, #tpu.memory_space<semaphore_mem>>) src(%96 : memref<128x128xbf16, #tpu.memory_space<any>>) dst(%98 : memref<128x128xbf16, #tpu.memory_space<vmem>>)
    %c0_72 = arith.constant 0 : index
    %c0_73 = arith.constant 0 : index
    %c0_74 = arith.constant 0 : index
    %101 = vector.load %arg6[%c0_72, %c0_73, %c0_74] : memref<2x128x128xbf16, #tpu.memory_space<vmem>>, vector<1x128x128xbf16>
    %102 = vector.shape_cast %101 : vector<1x128x128xbf16> to vector<128x128xbf16>
    %103 = arith.extf %102 : vector<128x128xbf16> to vector<128x128xf32>
    %cst_75 = arith.constant dense<0.000000e+00> : vector<8x128xf32>
    %104 = tpu.matmul %88, %103, %cst_75 {dimension_numbers = #tpu.dot_dimension_numbers<[1], [0], [0], [1], [0, 0, 1, 1], [], []>} : vector<8x128xf32>, vector<128x128xf32>, vector<8x128xf32> -> vector<8x128xf32>
    %c2 = arith.constant 2 : index
    %c0_76 = arith.constant 0 : index
    %105 = vector.load %arg1[%c2, %c0_76] : memref<11x256xf32, #tpu.memory_space<vmem>>, vector<1x128xf32>
    %c7 = arith.constant 7 : index
    %c0_77 = arith.constant 0 : index
    %106 = vector.load %arg1[%c7, %c0_77] : memref<11x256xf32, #tpu.memory_space<vmem>>, vector<1x128xf32>
    %cst_78 = arith.constant dense<0.000000e+00> : vector<128xf32>
    %107 = vector.multi_reduction <add>, %104, %cst_78 [0] : vector<8x128xf32> to vector<128xf32>
    %108 = vector.shape_cast %107 : vector<128xf32> to vector<1x128xf32>
    %cst_79 = arith.constant 1.250000e-01 : f32
    %109 = vector.broadcast %cst_79 : f32 to vector<1x128xf32>
    %110 = arith.mulf %108, %109 : vector<1x128xf32>
    %111 = vector.broadcast %110 : vector<1x128xf32> to vector<8x128xf32>
    %112 = arith.subf %104, %111 : vector<8x128xf32>
    %113 = arith.mulf %112, %112 : vector<8x128xf32>
    %cst_80 = arith.constant dense<0.000000e+00> : vector<128xf32>
    %114 = vector.multi_reduction <add>, %113, %cst_80 [0] : vector<8x128xf32> to vector<128xf32>
    %115 = vector.shape_cast %114 : vector<128xf32> to vector<1x128xf32>
    %cst_81 = arith.constant 1.250000e-01 : f32
    %116 = vector.broadcast %cst_81 : f32 to vector<1x128xf32>
    %117 = arith.mulf %115, %116 : vector<1x128xf32>
    %cst_82 = arith.constant 9.99999974E-6 : f32
    %118 = vector.broadcast %cst_82 : f32 to vector<1x128xf32>
    %119 = arith.addf %117, %118 : vector<1x128xf32>
    %120 = math.rsqrt %119 : vector<1x128xf32>
    %121 = arith.mulf %105, %120 : vector<1x128xf32>
    %122 = vector.broadcast %121 : vector<1x128xf32> to vector<8x128xf32>
    %123 = arith.mulf %112, %122 : vector<8x128xf32>
    %124 = vector.broadcast %106 : vector<1x128xf32> to vector<8x128xf32>
    %125 = arith.addf %123, %124 : vector<8x128xf32>
    %cst_83 = arith.constant 0.000000e+00 : f32
    %126 = vector.broadcast %cst_83 : f32 to vector<8x128xf32>
    %127 = arith.maximumf %125, %126 : vector<8x128xf32>
    %c3_i32_84 = arith.constant 3 : i32
    %c1_i32_85 = arith.constant 1 : i32
    %c1_i32_86 = arith.constant 1 : i32
    %c0_i32_87 = arith.constant 0 : i32
    %c0_i32_88 = arith.constant 0 : i32
    %128 = tpu.memref_slice %arg2[%c3_i32_84, %c0_i32_87, %c0_i32_88] : memref<4x128x128xbf16, #tpu.memory_space<any>> -> memref<1x128x128xbf16, #tpu.memory_space<any>>
    %129 = tpu.memref_squeeze %128 : memref<1x128x128xbf16, #tpu.memory_space<any>> -> memref<128x128xbf16, #tpu.memory_space<any>>
    %c0_i32_89 = arith.constant 0 : i32
    %c0_i32_90 = arith.constant 0 : i32
    %130 = tpu.memref_slice %arg6[%c1_i32_85, %c0_i32_89, %c0_i32_90] : memref<2x128x128xbf16, #tpu.memory_space<vmem>> -> memref<1x128x128xbf16, #tpu.memory_space<vmem>>
    %131 = tpu.memref_squeeze %130 : memref<1x128x128xbf16, #tpu.memory_space<vmem>> -> memref<128x128xbf16, #tpu.memory_space<vmem>>
    %132 = tpu.memref_slice %arg9[%c1_i32_86] : memref<4x!tpu.dma_semaphore, #tpu.memory_space<semaphore_mem>> -> memref<1x!tpu.dma_semaphore, #tpu.memory_space<semaphore_mem>>
    %133 = tpu.memref_squeeze %132 : memref<1x!tpu.dma_semaphore, #tpu.memory_space<semaphore_mem>> -> memref<!tpu.dma_semaphore, #tpu.memory_space<semaphore_mem>>
    tpu.wait_dma2 semaphore(%133 : memref<!tpu.dma_semaphore, #tpu.memory_space<semaphore_mem>>) src(%129 : memref<128x128xbf16, #tpu.memory_space<any>>) dst(%131 : memref<128x128xbf16, #tpu.memory_space<vmem>>)
    %c1_91 = arith.constant 1 : index
    %c0_92 = arith.constant 0 : index
    %c0_93 = arith.constant 0 : index
    %134 = vector.load %arg6[%c1_91, %c0_92, %c0_93] : memref<2x128x128xbf16, #tpu.memory_space<vmem>>, vector<1x128x128xbf16>
    %135 = vector.shape_cast %134 : vector<1x128x128xbf16> to vector<128x128xbf16>
    %136 = arith.extf %135 : vector<128x128xbf16> to vector<128x128xf32>
    %cst_94 = arith.constant dense<0.000000e+00> : vector<8x128xf32>
    %137 = tpu.matmul %127, %136, %cst_94 {dimension_numbers = #tpu.dot_dimension_numbers<[1], [0], [0], [1], [0, 0, 1, 1], [], []>} : vector<8x128xf32>, vector<128x128xf32>, vector<8x128xf32> -> vector<8x128xf32>
    %c3 = arith.constant 3 : index
    %c0_95 = arith.constant 0 : index
    %138 = vector.load %arg1[%c3, %c0_95] : memref<11x256xf32, #tpu.memory_space<vmem>>, vector<1x128xf32>
    %c8 = arith.constant 8 : index
    %c0_96 = arith.constant 0 : index
    %139 = vector.load %arg1[%c8, %c0_96] : memref<11x256xf32, #tpu.memory_space<vmem>>, vector<1x128xf32>
    %cst_97 = arith.constant dense<0.000000e+00> : vector<128xf32>
    %140 = vector.multi_reduction <add>, %137, %cst_97 [0] : vector<8x128xf32> to vector<128xf32>
    %141 = vector.shape_cast %140 : vector<128xf32> to vector<1x128xf32>
    %cst_98 = arith.constant 1.250000e-01 : f32
    %142 = vector.broadcast %cst_98 : f32 to vector<1x128xf32>
    %143 = arith.mulf %141, %142 : vector<1x128xf32>
    %144 = vector.broadcast %143 : vector<1x128xf32> to vector<8x128xf32>
    %145 = arith.subf %137, %144 : vector<8x128xf32>
    %146 = arith.mulf %145, %145 : vector<8x128xf32>
    %cst_99 = arith.constant dense<0.000000e+00> : vector<128xf32>
    %147 = vector.multi_reduction <add>, %146, %cst_99 [0] : vector<8x128xf32> to vector<128xf32>
    %148 = vector.shape_cast %147 : vector<128xf32> to vector<1x128xf32>
    %cst_100 = arith.constant 1.250000e-01 : f32
    %149 = vector.broadcast %cst_100 : f32 to vector<1x128xf32>
    %150 = arith.mulf %148, %149 : vector<1x128xf32>
    %cst_101 = arith.constant 9.99999974E-6 : f32
    %151 = vector.broadcast %cst_101 : f32 to vector<1x128xf32>
    %152 = arith.addf %150, %151 : vector<1x128xf32>
    %153 = math.rsqrt %152 : vector<1x128xf32>
    %154 = arith.mulf %138, %153 : vector<1x128xf32>
    %155 = vector.broadcast %154 : vector<1x128xf32> to vector<8x128xf32>
    %156 = arith.mulf %145, %155 : vector<8x128xf32>
    %157 = vector.broadcast %139 : vector<1x128xf32> to vector<8x128xf32>
    %158 = arith.addf %156, %157 : vector<8x128xf32>
    %cst_102 = arith.constant 0.000000e+00 : f32
    %159 = vector.broadcast %cst_102 : f32 to vector<8x128xf32>
    %160 = arith.maximumf %158, %159 : vector<8x128xf32>
    %c2_i32_103 = arith.constant 2 : i32
    %161 = tpu.memref_slice %arg9[%c2_i32_103] : memref<4x!tpu.dma_semaphore, #tpu.memory_space<semaphore_mem>> -> memref<1x!tpu.dma_semaphore, #tpu.memory_space<semaphore_mem>>
    %162 = tpu.memref_squeeze %161 : memref<1x!tpu.dma_semaphore, #tpu.memory_space<semaphore_mem>> -> memref<!tpu.dma_semaphore, #tpu.memory_space<semaphore_mem>>
    tpu.wait_dma2 semaphore(%162 : memref<!tpu.dma_semaphore, #tpu.memory_space<semaphore_mem>>) src(%arg3 : memref<128x256xbf16, #tpu.memory_space<any>>) dst(%arg7 : memref<128x256xbf16, #tpu.memory_space<vmem>>)
    %c0_104 = arith.constant 0 : index
    %c0_105 = arith.constant 0 : index
    %163 = vector.load %arg7[%c0_104, %c0_105] : memref<128x256xbf16, #tpu.memory_space<vmem>>, vector<128x256xbf16>
    %164 = arith.extf %163 : vector<128x256xbf16> to vector<128x256xf32>
    %cst_106 = arith.constant dense<0.000000e+00> : vector<8x256xf32>
    %165 = tpu.matmul %160, %164, %cst_106 {dimension_numbers = #tpu.dot_dimension_numbers<[1], [0], [0], [1], [0, 0, 1, 1], [], []>} : vector<8x128xf32>, vector<128x256xf32>, vector<8x256xf32> -> vector<8x256xf32>
    %c4 = arith.constant 4 : index
    %c0_107 = arith.constant 0 : index
    %166 = vector.load %arg1[%c4, %c0_107] : memref<11x256xf32, #tpu.memory_space<vmem>>, vector<1x256xf32>
    %c9 = arith.constant 9 : index
    %c0_108 = arith.constant 0 : index
    %167 = vector.load %arg1[%c9, %c0_108] : memref<11x256xf32, #tpu.memory_space<vmem>>, vector<1x256xf32>
    %cst_109 = arith.constant dense<0.000000e+00> : vector<256xf32>
    %168 = vector.multi_reduction <add>, %165, %cst_109 [0] : vector<8x256xf32> to vector<256xf32>
    %169 = vector.shape_cast %168 : vector<256xf32> to vector<1x256xf32>
    %cst_110 = arith.constant 1.250000e-01 : f32
    %170 = vector.broadcast %cst_110 : f32 to vector<1x256xf32>
    %171 = arith.mulf %169, %170 : vector<1x256xf32>
    %172 = vector.broadcast %171 : vector<1x256xf32> to vector<8x256xf32>
    %173 = arith.subf %165, %172 : vector<8x256xf32>
    %174 = arith.mulf %173, %173 : vector<8x256xf32>
    %cst_111 = arith.constant dense<0.000000e+00> : vector<256xf32>
    %175 = vector.multi_reduction <add>, %174, %cst_111 [0] : vector<8x256xf32> to vector<256xf32>
    %176 = vector.shape_cast %175 : vector<256xf32> to vector<1x256xf32>
    %cst_112 = arith.constant 1.250000e-01 : f32
    %177 = vector.broadcast %cst_112 : f32 to vector<1x256xf32>
    %178 = arith.mulf %176, %177 : vector<1x256xf32>
    %cst_113 = arith.constant 9.99999974E-6 : f32
    %179 = vector.broadcast %cst_113 : f32 to vector<1x256xf32>
    %180 = arith.addf %178, %179 : vector<1x256xf32>
    %181 = math.rsqrt %180 : vector<1x256xf32>
    %182 = arith.mulf %166, %181 : vector<1x256xf32>
    %183 = vector.broadcast %182 : vector<1x256xf32> to vector<8x256xf32>
    %184 = arith.mulf %173, %183 : vector<8x256xf32>
    %185 = vector.broadcast %167 : vector<1x256xf32> to vector<8x256xf32>
    %186 = arith.addf %184, %185 : vector<8x256xf32>
    %cst_114 = arith.constant 0.000000e+00 : f32
    %187 = vector.broadcast %cst_114 : f32 to vector<8x256xf32>
    %188 = arith.maximumf %186, %187 : vector<8x256xf32>
    %c3_i32_115 = arith.constant 3 : i32
    %189 = tpu.memref_slice %arg9[%c3_i32_115] : memref<4x!tpu.dma_semaphore, #tpu.memory_space<semaphore_mem>> -> memref<1x!tpu.dma_semaphore, #tpu.memory_space<semaphore_mem>>
    %190 = tpu.memref_squeeze %189 : memref<1x!tpu.dma_semaphore, #tpu.memory_space<semaphore_mem>> -> memref<!tpu.dma_semaphore, #tpu.memory_space<semaphore_mem>>
    tpu.wait_dma2 semaphore(%190 : memref<!tpu.dma_semaphore, #tpu.memory_space<semaphore_mem>>) src(%arg4 : memref<256x128xbf16, #tpu.memory_space<any>>) dst(%arg8 : memref<256x128xbf16, #tpu.memory_space<vmem>>)
    %c0_116 = arith.constant 0 : index
    %c0_117 = arith.constant 0 : index
    %191 = vector.load %arg8[%c0_116, %c0_117] : memref<256x128xbf16, #tpu.memory_space<vmem>>, vector<256x128xbf16>
    %192 = arith.extf %191 : vector<256x128xbf16> to vector<256x128xf32>
    %cst_118 = arith.constant dense<0.000000e+00> : vector<8x128xf32>
    %193 = tpu.matmul %188, %192, %cst_118 {dimension_numbers = #tpu.dot_dimension_numbers<[1], [0], [0], [1], [0, 0, 1, 1], [], []>} : vector<8x256xf32>, vector<256x128xf32>, vector<8x128xf32> -> vector<8x128xf32>
    %c10 = arith.constant 10 : index
    %c0_119 = arith.constant 0 : index
    %194 = vector.load %arg1[%c10, %c0_119] : memref<11x256xf32, #tpu.memory_space<vmem>>, vector<1x128xf32>
    %195 = vector.broadcast %194 : vector<1x128xf32> to vector<8x128xf32>
    %196 = arith.addf %193, %195 : vector<8x128xf32>
    %c0_120 = arith.constant 0 : index
    %c0_121 = arith.constant 0 : index
    %197 = vector.load %arg5[%c0_120, %c0_121] : memref<8x128xf32, #tpu.memory_space<vmem>>, vector<8x128xf32>
    tpu.vector_store %arg5[%c0_120, %c0_121], %196 {strides = array<i32>} : memref<8x128xf32, #tpu.memory_space<vmem>>, vector<8x128xf32>,
    return
  }
}

</mosaic_0001>

<llo_original>
// kernel: decoder_forward.1
$region0: #{decoder_forward.1}
  #allocation0 [shape = 'u32[]', space=smem, size = 0x4, offset = 0x4, fixed_abs, tag = 'smem constant byte address 0x4 - core index']
  #allocation1 [shape = 'u32[72,128]{1,0:T(1,128)}', space=vmem, size = 0x9000, scoped, tag = 'internal scratch']
  #allocation2 [shape = 'bf16[2,128,128]{2,1,0:T(8,128)(2,1)}', space=vmem, size = 0x10000, scoped, tag = 'scratch operand']
  #allocation3 [shape = 'bf16[128,256]{1,0:T(8,128)(2,1)}', space=vmem, size = 0x10000, scoped, tag = 'scratch operand']
  #allocation4 [shape = 'bf16[256,128]{1,0:T(8,128)(2,1)}', space=vmem, size = 0x10000, scoped, tag = 'scratch operand']
  #allocation5 [shape = 's32[4]{0}', space=sflag, size = 0x10, scoped, tag = 'scratch operand']
  #allocation8 [shape = 's32[]', space=sflag, size = 0x4, offset = 0, fixed_abs, tag = 'sflag constant byte address 0x0 - dummy sync flag']
  #allocation9 [shape = 's32[]', space=sflag, size = 0x4, offset = 0, fixed_abs, tag = 'sflag constant byte address 0x0 - dummy sync flag']
  #allocation10 [shape = 'u32[]', space=smem, size = 0x4, offset = 0x44, fixed_abs, tag = 'smem constant byte address 0x44 - assertion arg 0']
  #allocation11 [shape = 'u32[]', space=smem, size = 0x4, offset = 0x48, fixed_abs, tag = 'smem constant byte address 0x48 - assertion arg 1']
  #allocation12 [shape = 's32[]', space=sflag, size = 0x4, offset = 0, fixed_abs, tag = 'sflag constant byte address 0x0 - dummy sync flag']
  #allocation13 [shape = 's32[]', space=sflag, size = 0x4, offset = 0, fixed_abs, tag = 'sflag constant byte address 0x0 - dummy sync flag']
  #allocation14 [shape = 's32[]', space=sflag, size = 0x4, offset = 0, fixed_abs, tag = 'sflag constant byte address 0x0 - dummy sync flag']
  #allocation15 [shape = 's32[]', space=sflag, size = 0x4, offset = 0, fixed_abs, tag = 'sflag constant byte address 0x0 - dummy sync flag']
  #allocation16 [shape = 's32[]', space=sflag, size = 0x4, offset = 0, fixed_abs, tag = 'sflag constant byte address 0x0 - dummy sync flag']
  #allocation17 [shape = 's32[]', space=sflag, size = 0x4, offset = 0, fixed_abs, tag = 'sflag constant byte address 0x0 - dummy sync flag']
  #allocation18 [shape = 's32[]', space=sflag, size = 0x4, offset = 0, fixed_abs, tag = 'sflag constant byte address 0x0 - dummy sync flag']
  #allocation19 [shape = 's32[]', space=sflag, size = 0x4, offset = 0, fixed_abs, tag = 'sflag constant byte address 0x0 - dummy sync flag']
  #allocation20 [shape = 's32[]', space=sflag, size = 0x4, offset = 0, fixed_abs, tag = 'sflag constant byte address 0x0 - dummy sync flag']
  #allocation21 [shape = 's32[]', space=sflag, size = 0x4, offset = 0, fixed_abs, tag = 'sflag constant byte address 0x0 - dummy sync flag']
  %s0 = inlined_call_operand.vmem [shape: f32[8,128], index: 0, kind: input, shape index: {}]
  %s1 = inlined_call_operand.vmem [shape: f32[11,256], index: 1, kind: input, shape index: {}]
  %s2 = inlined_call_operand.hbm [shape: bf16[4,128,128], index: 2, kind: input, shape index: {}]
  %s3 = inlined_call_operand.hbm [shape: bf16[128,256], index: 3, kind: input, shape index: {}]
  %s4 = inlined_call_operand.hbm [shape: bf16[256,128], index: 4, kind: input, shape index: {}]
  %s5 = inlined_call_operand.hbm [shape: f32[8,128], index: 5, kind: output, shape index: {}]
  %s6 = sld [smem:[#allocation0]]
  $region42: #{decoder_forward.1} parent=0
    _
  %s8 = ssub.s32 1, %s6
  %s9 = scalar_select 0, %s8, %s6
  $region1: #{decoder_forward.1} parent=0
    #allocation6 [shape = 'u8[4096]{0}', space=vmem, size = 0x1000, scoped, tag = 'output window, operand 0, single buffered']
    #allocation7 [shape = 's32[1]{0}', space=sflag, size = 0x4, scoped, tag = 'scoped memory for decoder_forward.1']
    %10 = vsyncpa [#allocation7], 0
    // Predicated region
    $region2: #{decoder_forward.1} parent=1 // pred_check
      _
    $region3: #{decoder_forward.1} parent=1 // pred_check_branch
      %12 = sbr.rel (0) target = $region5
    $region4: #{decoder_forward.1} parent=1 // pred_region
      _
    $region5: #{decoder_forward.1} parent=1 // pred_fallthru
      _
    // Predicated region
    $region6: #{decoder_forward.1} parent=1 // pred_check
      _
    $region7: #{decoder_forward.1} parent=1 // pred_check_branch
      %14 = sbr.rel (0) target = $region9
    $region8: #{decoder_forward.1} parent=1 // pred_region
      _
    $region9: #{decoder_forward.1} parent=1 // pred_fallthru
      _
    // Predicated region
    $region10: #{decoder_forward.1} parent=1 // pred_check
      _
    $region11: #{decoder_forward.1} parent=1 // pred_check_branch
      %16 = sbr.rel target = $region13
    $region12: #{decoder_forward.1} parent=1 // pred_region
      %17 = sst [smem:[#allocation10]] [#allocation9]
      %18 = sst [smem:[#allocation11]] [#allocation8]
    $region13: #{decoder_forward.1} parent=1 // pred_fallthru
      _
    %20 = shalt.err (0)
    %s22 = sshll.u32 %s2, 4
    %s23 = int_to_ptr.hbm [resolvable:$true] %s22
    %s24 = sshll.u32 [#allocation2], 4
    %s25 = int_to_ptr.vmem [resolvable:$true] %s24
    %27 = dma.hbm_to_vmem [thread:$0]  %s23, 1024, %s25, [#allocation5]
    %s28 = scalar_lea.sflag [#allocation5], 2
    // Predicated region
    $region14: #{decoder_forward.1} parent=1 // pred_check
      _
    $region15: #{decoder_forward.1} parent=1 // pred_check_branch
      %30 = sbr.rel target = $region17
    $region16: #{decoder_forward.1} parent=1 // pred_region
      %31 = sst [smem:[#allocation10]] [#allocation13]
      %32 = sst [smem:[#allocation11]] [#allocation12]
    $region17: #{decoder_forward.1} parent=1 // pred_fallthru
      _
    %34 = shalt.err (0)
    %s36 = sshll.u32 %s3, 4
    %s37 = int_to_ptr.hbm [resolvable:$true] %s36
    %s38 = sshll.u32 [#allocation3], 4
    %s39 = int_to_ptr.vmem [resolvable:$true] %s38
    %41 = dma.hbm_to_vmem [thread:$0]  %s37, 2048, %s39, %s28
    %s42 = scalar_lea.sflag [#allocation5], 3
    // Predicated region
    $region18: #{decoder_forward.1} parent=1 // pred_check
      _
    $region19: #{decoder_forward.1} parent=1 // pred_check_branch
      %44 = sbr.rel target = $region21
    $region20: #{decoder_forward.1} parent=1 // pred_region
      %45 = sst [smem:[#allocation10]] [#allocation15]
      %46 = sst [smem:[#allocation11]] [#allocation14]
    $region21: #{decoder_forward.1} parent=1 // pred_fallthru
      _
    %48 = shalt.err (0)
    %s50 = sshll.u32 %s4, 4
    %s51 = int_to_ptr.hbm [resolvable:$true] %s50
    %s52 = sshll.u32 [#allocation4], 4
    %s53 = int_to_ptr.vmem [resolvable:$true] %s52
    %55 = dma.hbm_to_vmem [thread:$0]  %s51, 2048, %s53, %s42
    %v56 = vld [vmem:[%s0] sm:$0xff]
    %s57 = scalar_lea.hbm %s2, 64
    %s58 = scalar_lea.vmem [#allocation2], 64
    %s59 = scalar_lea.sflag [#allocation5], 1
    // Predicated region
    $region22: #{decoder_forward.1} parent=1 // pred_check
      _
    $region23: #{decoder_forward.1} parent=1 // pred_check_branch
      %61 = sbr.rel target = $region25
    $region24: #{decoder_forward.1} parent=1 // pred_region
      %62 = sst [smem:[#allocation10]] [#allocation17]
      %63 = sst [smem:[#allocation11]] [#allocation16]
    $region25: #{decoder_forward.1} parent=1 // pred_fallthru
      _
    %65 = shalt.err (0)
    %s67 = sshll.u32 %s57, 4
    %s68 = int_to_ptr.hbm [resolvable:$true] %s67
    %s69 = sshll.u32 %s58, 4
    %s70 = int_to_ptr.vmem [resolvable:$true] %s69
    %72 = dma.hbm_to_vmem [thread:$0]  %s68, 1024, %s70, %s59
    %s73 = smul.u32 4, 16
    %s74 = smul.u32 %s73, 1
    %s75 = sshll.u32 %s74, 4
    %76 = dma.done [#allocation5], %s75
    %v77 = vld [vmem:[#allocation2] sm:$0xf]
    %v78 = vld [vmem:[#allocation2 + $0x4] sm:$0xf]
    %v79 = vld [vmem:[#allocation2 + $0x8] sm:$0xf]
    %v80 = vld [vmem:[#allocation2 + $0xc] sm:$0xf]
    %v81 = vld [vmem:[#allocation2 + $0x10] sm:$0xf]
    %v82 = vld [vmem:[#allocation2 + $0x14] sm:$0xf]
    %v83 = vld [vmem:[#allocation2 + $0x18] sm:$0xf]
    %v84 = vld [vmem:[#allocation2 + $0x1c] sm:$0xf]
    %v85 = vld [vmem:[#allocation2 + $0x20] sm:$0xf]
    %v86 = vld [vmem:[#allocation2 + $0x24] sm:$0xf]
    %v87 = vld [vmem:[#allocation2 + $0x28] sm:$0xf]
    %v88 = vld [vmem:[#allocation2 + $0x2c] sm:$0xf]
    %v89 = vld [vmem:[#allocation2 + $0x30] sm:$0xf]
    %v90 = vld [vmem:[#allocation2 + $0x34] sm:$0xf]
    %v91 = vld [vmem:[#allocation2 + $0x38] sm:$0xf]
    %v92 = vld [vmem:[#allocation2 + $0x3c] sm:$0xf]
    %v93 = vunpack.c.l.bf16 %v77
    %v94 = vunpack.c.l.bf16 %v78
    %v95 = vunpack.c.l.bf16 %v79
    %v96 = vunpack.c.l.bf16 %v80
    %v97 = vunpack.c.l.bf16 %v81
    %v98 = vunpack.c.l.bf16 %v82
    %v99 = vunpack.c.l.bf16 %v83
    %v100 = vunpack.c.l.bf16 %v84
    %v101 = vunpack.c.l.bf16 %v85
    %v102 = vunpack.c.l.bf16 %v86
    %v103 = vunpack.c.l.bf16 %v87
    %v104 = vunpack.c.l.bf16 %v88
    %v105 = vunpack.c.l.bf16 %v89
    %v106 = vunpack.c.l.bf16 %v90
    %v107 = vunpack.c.l.bf16 %v91
    %v108 = vunpack.c.l.bf16 %v92
    %109 = vmatpush.msra.mxu0 %v108
    %110 = vmatpush.msra.mxu0 %v107
    %111 = vmatpush.msra.mxu0 %v106
    %112 = vmatpush.msra.mxu0 %v105
    %113 = vmatpush.msra.mxu0 %v104
    %114 = vmatpush.msra.mxu0 %v103
    %115 = vmatpush.msra.mxu0 %v102
    %116 = vmatpush.msra.mxu0 %v101
    %117 = vmatpush.msra.mxu0 %v100
    %118 = vmatpush.msra.mxu0 %v99
    %119 = vmatpush.msra.mxu0 %v98
    %120 = vmatpush.msra.mxu0 %v97
    %121 = vmatpush.msra.mxu0 %v96
    %122 = vmatpush.msra.mxu0 %v95
    %123 = vmatpush.msra.mxu0 %v94
    %124 = vmatpush.msra.mxu0 %v93
    %125 = vmatmul.f32.gmra.mxu0 %v56
    %v126 = vpop.f32.mrf.mxu0
    %v127 = vadd.f32 0.0, %v126
    %128 = vdwg.mxu0
    %v129 = vld [vmem:[%s1] ss:$0 sm:$0xff]
    %v130 = vld [vmem:[%s1 + $0x5] ss:$0 sm:$0xff]
    %v131 = vrot.slane %v127, 4
    %v132 = vadd.f32 %v127, %v131
    %v133 = vrot.slane %v132, 2
    %v134 = vadd.f32 %v132, %v133
    %v135 = vrot.slane %v134, 1
    %v136 = vadd.f32 %v134, %v135
    %v137 = vmul.f32 %v136, 0.125
    %v138 = vsub.f32 %v127, %v137
    %v139 = vmul.f32 %v138, %v138
    %v140 = vrot.slane %v139, 4
    %v141 = vadd.f32 %v139, %v140
    %v142 = vrot.slane %v141, 2
    %v143 = vadd.f32 %v141, %v142
    %v144 = vrot.slane %v143, 1
    %v145 = vadd.f32 %v143, %v144
    %v146 = vmul.f32 %v145, 0.125
    %v147 = vadd.f32 %v146, 1e-05
    %v148 = vrsqrt.pop %v147
    %v149 = vmul.f32 %v148, %v147
    %v150 = vmul.f32 %v149, %v148
    %v151 = vmul.f32 0.5, %v150
    %v152 = vsub.f32 1.5, %v151
    %v153 = vmul.f32 %v148, %v152
    %vm154 = vweird.f32 %v147
    %vm155 = vweird.f32 %v148
    %vm156 = vmor %vm154, %vm155
    %v157 = vsel %vm156, %v148, %v153
    %v158 = vmul.f32 %v129, %v157
    %v159 = vmul.f32 %v138, %v158
    %v160 = vadd.f32 %v159, %v130
    %v161 = vmax.f32 %v160, 0.0
    %s162 = scalar_lea.hbm %s2, 128
    // Predicated region
    $region26: #{decoder_forward.1} parent=1 // pred_check
      _
    $region27: #{decoder_forward.1} parent=1 // pred_check_branch
      %164 = sbr.rel target = $region29
    $region28: #{decoder_forward.1} parent=1 // pred_region
      %165 = sst [smem:[#allocation10]] [#allocation19]
      %166 = sst [smem:[#allocation11]] [#allocation18]
    $region29: #{decoder_forward.1} parent=1 // pred_fallthru
      _
    %168 = shalt.err (0)
    %s170 = sshll.u32 %s162, 4
    %s171 = int_to_ptr.hbm [resolvable:$true] %s170
    %s172 = sshll.u32 [#allocation2], 4
    %s173 = int_to_ptr.vmem [resolvable:$true] %s172
    %175 = dma.hbm_to_vmem [thread:$0]  %s171, 1024, %s173, [#allocation5]
    %s176 = sshll.u32 %s74, 4
    %177 = dma.done %s59, %s176
    %v178 = vld [vmem:[%s58] sm:$0xf]
    %v179 = vld [vmem:[%s58 + $0x4] sm:$0xf]
    %v180 = vld [vmem:[%s58 + $0x8] sm:$0xf]
    %v181 = vld [vmem:[%s58 + $0xc] sm:$0xf]
    %v182 = vld [vmem:[%s58 + $0x10] sm:$0xf]
    %v183 = vld [vmem:[%s58 + $0x14] sm:$0xf]
    %v184 = vld [vmem:[%s58 + $0x18] sm:$0xf]
    %v185 = vld [vmem:[%s58 + $0x1c] sm:$0xf]
    %v186 = vld [vmem:[%s58 + $0x20] sm:$0xf]
    %v187 = vld [vmem:[%s58 + $0x24] sm:$0xf]
    %v188 = vld [vmem:[%s58 + $0x28] sm:$0xf]
    %v189 = vld [vmem:[%s58 + $0x2c] sm:$0xf]
    %v190 = vld [vmem:[%s58 + $0x30] sm:$0xf]
    %v191 = vld [vmem:[%s58 + $0x34] sm:$0xf]
    %v192 = vld [vmem:[%s58 + $0x38] sm:$0xf]
    %v193 = vld [vmem:[%s58 + $0x3c] sm:$0xf]
    %v194 = vunpack.c.l.bf16 %v178
    %v195 = vunpack.c.l.bf16 %v179
    %v196 = vunpack.c.l.bf16 %v180
    %v197 = vunpack.c.l.bf16 %v181
    %v198 = vunpack.c.l.bf16 %v182
    %v199 = vunpack.c.l.bf16 %v183
    %v200 = vunpack.c.l.bf16 %v184
    %v201 = vunpack.c.l.bf16 %v185
    %v202 = vunpack.c.l.bf16 %v186
    %v203 = vunpack.c.l.bf16 %v187
    %v204 = vunpack.c.l.bf16 %v188
    %v205 = vunpack.c.l.bf16 %v189
    %v206 = vunpack.c.l.bf16 %v190
    %v207 = vunpack.c.l.bf16 %v191
    %v208 = vunpack.c.l.bf16 %v192
    %v209 = vunpack.c.l.bf16 %v193
    %210 = vmatpush.msra.mxu0 %v209
    %211 = vmatpush.msra.mxu0 %v208
    %212 = vmatpush.msra.mxu0 %v207
    %213 = vmatpush.msra.mxu0 %v206
    %214 = vmatpush.msra.mxu0 %v205
    %215 = vmatpush.msra.mxu0 %v204
    %216 = vmatpush.msra.mxu0 %v203
    %217 = vmatpush.msra.mxu0 %v202
    %218 = vmatpush.msra.mxu0 %v201
    %219 = vmatpush.msra.mxu0 %v200
    %220 = vmatpush.msra.mxu0 %v199
    %221 = vmatpush.msra.mxu0 %v198
    %222 = vmatpush.msra.mxu0 %v197
    %223 = vmatpush.msra.mxu0 %v196
    %224 = vmatpush.msra.mxu0 %v195
    %225 = vmatpush.msra.mxu0 %v194
    %226 = vmatmul.f32.gmra.mxu0 %v161
    %v227 = vpop.f32.mrf.mxu0
    %v228 = vadd.f32 0.0, %v227
    %229 = vdwg.mxu0
    %v230 = vld [vmem:[%s1 + $0x1] ss:$0 sm:$0xff]
    %v231 = vld [vmem:[%s1 + $0x6] ss:$0 sm:$0xff]
    %v232 = vrot.slane %v228, 4
    %v233 = vadd.f32 %v228, %v232
    %v234 = vrot.slane %v233, 2
    %v235 = vadd.f32 %v233, %v234
    %v236 = vrot.slane %v235, 1
    %v237 = vadd.f32 %v235, %v236
    %v238 = vmul.f32 %v237, 0.125
    %v239 = vsub.f32 %v228, %v238
    %v240 = vmul.f32 %v239, %v239
    %v241 = vrot.slane %v240, 4
    %v242 = vadd.f32 %v240, %v241
    %v243 = vrot.slane %v242, 2
    %v244 = vadd.f32 %v242, %v243
    %v245 = vrot.slane %v244, 1
    %v246 = vadd.f32 %v244, %v245
    %v247 = vmul.f32 %v246, 0.125
    %v248 = vadd.f32 %v247, 1e-05
    %v249 = vrsqrt.pop %v248
    %v250 = vmul.f32 %v249, %v248
    %v251 = vmul.f32 %v250, %v249
    %v252 = vmul.f32 0.5, %v251
    %v253 = vsub.f32 1.5, %v252
    %v254 = vmul.f32 %v249, %v253
    %vm255 = vweird.f32 %v248
    %vm256 = vweird.f32 %v249
    %vm257 = vmor %vm255, %vm256
    %v258 = vsel %vm257, %v249, %v254
    %v259 = vmul.f32 %v230, %v258
    %v260 = vmul.f32 %v239, %v259
    %v261 = vadd.f32 %v260, %v231
    %v262 = vmax.f32 %v261, 0.0
    %s263 = scalar_lea.hbm %s2, 192
    // Predicated region
    $region30: #{decoder_forward.1} parent=1 // pred_check
      _
    $region31: #{decoder_forward.1} parent=1 // pred_check_branch
      %265 = sbr.rel target = $region33
    $region32: #{decoder_forward.1} parent=1 // pred_region
      %266 = sst [smem:[#allocation10]] [#allocation21]
      %267 = sst [smem:[#allocation11]] [#allocation20]
    $region33: #{decoder_forward.1} parent=1 // pred_fallthru
      _
    %269 = shalt.err (0)
    %s271 = sshll.u32 %s263, 4
    %s272 = int_to_ptr.hbm [resolvable:$true] %s271
    %s273 = sshll.u32 %s58, 4
    %s274 = int_to_ptr.vmem [resolvable:$true] %s273
    %276 = dma.hbm_to_vmem [thread:$0]  %s272, 1024, %s274, %s59
    %s277 = sshll.u32 %s74, 4
    %278 = dma.done [#allocation5], %s277
    %v279 = vld [vmem:[#allocation2] sm:$0xf]
    %v280 = vld [vmem:[#allocation2 + $0x4] sm:$0xf]
    %v281 = vld [vmem:[#allocation2 + $0x8] sm:$0xf]
    %v282 = vld [vmem:[#allocation2 + $0xc] sm:$0xf]
    %v283 = vld [vmem:[#allocation2 + $0x10] sm:$0xf]
    %v284 = vld [vmem:[#allocation2 + $0x14] sm:$0xf]
    %v285 = vld [vmem:[#allocation2 + $0x18] sm:$0xf]
    %v286 = vld [vmem:[#allocation2 + $0x1c] sm:$0xf]
    %v287 = vld [vmem:[#allocation2 + $0x20] sm:$0xf]
    %v288 = vld [vmem:[#allocation2 + $0x24] sm:$0xf]
    %v289 = vld [vmem:[#allocation2 + $0x28] sm:$0xf]
    %v290 = vld [vmem:[#allocation2 + $0x2c] sm:$0xf]
    %v291 = vld [vmem:[#allocation2 + $0x30] sm:$0xf]
    %v292 = vld [vmem:[#allocation2 + $0x34] sm:$0xf]
    %v293 = vld [vmem:[#allocation2 + $0x38] sm:$0xf]
    %v294 = vld [vmem:[#allocation2 + $0x3c] sm:$0xf]
    %v295 = vunpack.c.l.bf16 %v279
    %v296 = vunpack.c.l.bf16 %v280
    %v297 = vunpack.c.l.bf16 %v281
    %v298 = vunpack.c.l.bf16 %v282
    %v299 = vunpack.c.l.bf16 %v283
    %v300 = vunpack.c.l.bf16 %v284
    %v301 = vunpack.c.l.bf16 %v285
    %v302 = vunpack.c.l.bf16 %v286
    %v303 = vunpack.c.l.bf16 %v287
    %v304 = vunpack.c.l.bf16 %v288
    %v305 = vunpack.c.l.bf16 %v289
    %v306 = vunpack.c.l.bf16 %v290
    %v307 = vunpack.c.l.bf16 %v291
    %v308 = vunpack.c.l.bf16 %v292
    %v309 = vunpack.c.l.bf16 %v293
    %v310 = vunpack.c.l.bf16 %v294
    %311 = vmatpush.msra.mxu0 %v310
    %312 = vmatpush.msra.mxu0 %v309
    %313 = vmatpush.msra.mxu0 %v308
    %314 = vmatpush.msra.mxu0 %v307
    %315 = vmatpush.msra.mxu0 %v306
    %316 = vmatpush.msra.mxu0 %v305
    %317 = vmatpush.msra.mxu0 %v304
    %318 = vmatpush.msra.mxu0 %v303
    %319 = vmatpush.msra.mxu0 %v302
    %320 = vmatpush.msra.mxu0 %v301
    %321 = vmatpush.msra.mxu0 %v300
    %322 = vmatpush.msra.mxu0 %v299
    %323 = vmatpush.msra.mxu0 %v298
    %324 = vmatpush.msra.mxu0 %v297
    %325 = vmatpush.msra.mxu0 %v296
    %326 = vmatpush.msra.mxu0 %v295
    %327 = vmatmul.f32.gmra.mxu0 %v262
    %v328 = vpop.f32.mrf.mxu0
    %v329 = vadd.f32 0.0, %v328
    %330 = vdwg.mxu0
    %v331 = vld [vmem:[%s1 + $0x2] ss:$0 sm:$0xff]
    %v332 = vld [vmem:[%s1 + $0x7] ss:$0 sm:$0xff]
    %v333 = vrot.slane %v329, 4
    %v334 = vadd.f32 %v329, %v333
    %v335 = vrot.slane %v334, 2
    %v336 = vadd.f32 %v334, %v335
    %v337 = vrot.slane %v336, 1
    %v338 = vadd.f32 %v336, %v337
    %v339 = vmul.f32 %v338, 0.125
    %v340 = vsub.f32 %v329, %v339
    %v341 = vmul.f32 %v340, %v340
    %v342 = vrot.slane %v341, 4
    %v343 = vadd.f32 %v341, %v342
    %v344 = vrot.slane %v343, 2
    %v345 = vadd.f32 %v343, %v344
    %v346 = vrot.slane %v345, 1
    %v347 = vadd.f32 %v345, %v346
    %v348 = vmul.f32 %v347, 0.125
    %v349 = vadd.f32 %v348, 1e-05
    %v350 = vrsqrt.pop %v349
    %v351 = vmul.f32 %v350, %v349
    %v352 = vmul.f32 %v351, %v350
    %v353 = vmul.f32 0.5, %v352
    %v354 = vsub.f32 1.5, %v353
    %v355 = vmul.f32 %v350, %v354
    %vm356 = vweird.f32 %v349
    %vm357 = vweird.f32 %v350
    %vm358 = vmor %vm356, %vm357
    %v359 = vsel %vm358, %v350, %v355
    %v360 = vmul.f32 %v331, %v359
    %v361 = vmul.f32 %v340, %v360
    %v362 = vadd.f32 %v361, %v332
    %v363 = vmax.f32 %v362, 0.0
    %s364 = sshll.u32 %s74, 4
    %365 = dma.done %s59, %s364
    %v366 = vld [vmem:[%s58] sm:$0xf]
    %v367 = vld [vmem:[%s58 + $0x4] sm:$0xf]
    %v368 = vld [vmem:[%s58 + $0x8] sm:$0xf]
    %v369 = vld [vmem:[%s58 + $0xc] sm:$0xf]
    %v370 = vld [vmem:[%s58 + $0x10] sm:$0xf]
    %v371 = vld [vmem:[%s58 + $0x14] sm:$0xf]
    %v372 = vld [vmem:[%s58 + $0x18] sm:$0xf]
    %v373 = vld [vmem:[%s58 + $0x1c] sm:$0xf]
    %v374 = vld [vmem:[%s58 + $0x20] sm:$0xf]
    %v375 = vld [vmem:[%s58 + $0x24] sm:$0xf]
    %v376 = vld [vmem:[%s58 + $0x28] sm:$0xf]
    %v377 = vld [vmem:[%s58 + $0x2c] sm:$0xf]
    %v378 = vld [vmem:[%s58 + $0x30] sm:$0xf]
    %v379 = vld [vmem:[%s58 + $0x34] sm:$0xf]
    %v380 = vld [vmem:[%s58 + $0x38] sm:$0xf]
    %v381 = vld [vmem:[%s58 + $0x3c] sm:$0xf]
    %v382 = vunpack.c.l.bf16 %v366
    %v383 = vunpack.c.l.bf16 %v367
    %v384 = vunpack.c.l.bf16 %v368
    %v385 = vunpack.c.l.bf16 %v369
    %v386 = vunpack.c.l.bf16 %v370
    %v387 = vunpack.c.l.bf16 %v371
    %v388 = vunpack.c.l.bf16 %v372
    %v389 = vunpack.c.l.bf16 %v373
    %v390 = vunpack.c.l.bf16 %v374
    %v391 = vunpack.c.l.bf16 %v375
    %v392 = vunpack.c.l.bf16 %v376
    %v393 = vunpack.c.l.bf16 %v377
    %v394 = vunpack.c.l.bf16 %v378
    %v395 = vunpack.c.l.bf16 %v379
    %v396 = vunpack.c.l.bf16 %v380
    %v397 = vunpack.c.l.bf16 %v381
    %398 = vmatpush.msra.mxu0 %v397
    %399 = vmatpush.msra.mxu0 %v396
    %400 = vmatpush.msra.mxu0 %v395
    %401 = vmatpush.msra.mxu0 %v394
    %402 = vmatpush.msra.mxu0 %v393
    %403 = vmatpush.msra.mxu0 %v392
    %404 = vmatpush.msra.mxu0 %v391
    %405 = vmatpush.msra.mxu0 %v390
    %406 = vmatpush.msra.mxu0 %v389
    %407 = vmatpush.msra.mxu0 %v388
    %408 = vmatpush.msra.mxu0 %v387
    %409 = vmatpush.msra.mxu0 %v386
    %410 = vmatpush.msra.mxu0 %v385
    %411 = vmatpush.msra.mxu0 %v384
    %412 = vmatpush.msra.mxu0 %v383
    %413 = vmatpush.msra.mxu0 %v382
    %414 = vmatmul.f32.gmra.mxu0 %v363
    %v415 = vpop.f32.mrf.mxu0
    %v416 = vadd.f32 0.0, %v415
    %417 = vdwg.mxu0
    %v418 = vld [vmem:[%s1 + $0x3] ss:$0 sm:$0xff]
    %v419 = vld [vmem:[%s1 + $0x10] ss:$0 sm:$0xff]
    %v420 = vrot.slane %v416, 4
    %v421 = vadd.f32 %v416, %v420
    %v422 = vrot.slane %v421, 2
    %v423 = vadd.f32 %v421, %v422
    %v424 = vrot.slane %v423, 1
    %v425 = vadd.f32 %v423, %v424
    %v426 = vmul.f32 %v425, 0.125
    %v427 = vsub.f32 %v416, %v426
    %v428 = vmul.f32 %v427, %v427
    %v429 = vrot.slane %v428, 4
    %v430 = vadd.f32 %v428, %v429
    %v431 = vrot.slane %v430, 2
    %v432 = vadd.f32 %v430, %v431
    %v433 = vrot.slane %v432, 1
    %v434 = vadd.f32 %v432, %v433
    %v435 = vmul.f32 %v434, 0.125
    %v436 = vadd.f32 %v435, 1e-05
    %v437 = vrsqrt.pop %v436
    %v438 = vmul.f32 %v437, %v436
    %v439 = vmul.f32 %v438, %v437
    %v440 = vmul.f32 0.5, %v439
    %v441 = vsub.f32 1.5, %v440
    %v442 = vmul.f32 %v437, %v441
    %vm443 = vweird.f32 %v436
    %vm444 = vweird.f32 %v437
    %vm445 = vmor %vm443, %vm444
    %v446 = vsel %vm445, %v437, %v442
    %v447 = vmul.f32 %v418, %v446
    %v448 = vmul.f32 %v427, %v447
    %v449 = vadd.f32 %v448, %v419
    %v450 = vmax.f32 %v449, 0.0
    %s451 = smul.u32 %s73, 2
    %s452 = sshll.u32 %s451, 4
    %453 = dma.done %s28, %s452
    %v454 = vld [vmem:[#allocation3] sm:$0xff]
    %v455 = vld [vmem:[#allocation3 + $0x8] sm:$0xff]
    %v456 = vld [vmem:[#allocation3 + $0x10] sm:$0xff]
    %v457 = vld [vmem:[#allocation3 + $0x18] sm:$0xff]
    %v458 = vld [vmem:[#allocation3 + $0x20] sm:$0xff]
    %v459 = vld [vmem:[#allocation3 + $0x28] sm:$0xff]
    %v460 = vld [vmem:[#allocation3 + $0x30] sm:$0xff]
    %v461 = vld [vmem:[#allocation3 + $0x38] sm:$0xff]
    %v462 = vld [vmem:[#allocation3 + $0x40] sm:$0xff]
    %v463 = vld [vmem:[#allocation3 + $0x48] sm:$0xff]
    %v464 = vld [vmem:[#allocation3 + $0x50] sm:$0xff]
    %v465 = vld [vmem:[#allocation3 + $0x58] sm:$0xff]
    %v466 = vld [vmem:[#allocation3 + $0x60] sm:$0xff]
    %v467 = vld [vmem:[#allocation3 + $0x68] sm:$0xff]
    %v468 = vld [vmem:[#allocation3 + $0x70] sm:$0xff]
    %v469 = vld [vmem:[#allocation3 + $0x78] sm:$0xff]
    %v470 = vunpack.c.l.bf16 %v454
    %v471 = vunpack.c.h.bf16 %v454
    %v472 = vunpack.c.l.bf16 %v455
    %v473 = vunpack.c.h.bf16 %v455
    %v474 = vunpack.c.l.bf16 %v456
    %v475 = vunpack.c.h.bf16 %v456
    %v476 = vunpack.c.l.bf16 %v457
    %v477 = vunpack.c.h.bf16 %v457
    %v478 = vunpack.c.l.bf16 %v458
    %v479 = vunpack.c.h.bf16 %v458
    %v480 = vunpack.c.l.bf16 %v459
    %v481 = vunpack.c.h.bf16 %v459
    %v482 = vunpack.c.l.bf16 %v460
    %v483 = vunpack.c.h.bf16 %v460
    %v484 = vunpack.c.l.bf16 %v461
    %v485 = vunpack.c.h.bf16 %v461
    %v486 = vunpack.c.l.bf16 %v462
    %v487 = vunpack.c.h.bf16 %v462
    %v488 = vunpack.c.l.bf16 %v463
    %v489 = vunpack.c.h.bf16 %v463
    %v490 = vunpack.c.l.bf16 %v464
    %v491 = vunpack.c.h.bf16 %v464
    %v492 = vunpack.c.l.bf16 %v465
    %v493 = vunpack.c.h.bf16 %v465
    %v494 = vunpack.c.l.bf16 %v466
    %v495 = vunpack.c.h.bf16 %v466
    %v496 = vunpack.c.l.bf16 %v467
    %v497 = vunpack.c.h.bf16 %v467
    %v498 = vunpack.c.l.bf16 %v468
    %v499 = vunpack.c.h.bf16 %v468
    %v500 = vunpack.c.l.bf16 %v469
    %v501 = vunpack.c.h.bf16 %v469
    %502 = vmatpush.msra.mxu0 %v500
    %503 = vmatpush.msra.mxu0 %v498
    %504 = vmatpush.msra.mxu0 %v496
    %505 = vmatpush.msra.mxu0 %v494
    %506 = vmatpush.msra.mxu0 %v492
    %507 = vmatpush.msra.mxu0 %v490
    %508 = vmatpush.msra.mxu0 %v488
    %509 = vmatpush.msra.mxu0 %v486
    %510 = vmatpush.msra.mxu0 %v484
    %511 = vmatpush.msra.mxu0 %v482
    %512 = vmatpush.msra.mxu0 %v480
    %513 = vmatpush.msra.mxu0 %v478
    %514 = vmatpush.msra.mxu0 %v476
    %515 = vmatpush.msra.mxu0 %v474
    %516 = vmatpush.msra.mxu0 %v472
    %517 = vmatpush.msra.mxu0 %v470
    %518 = vmatmul.f32.gmra.mxu0 %v450
    %v519 = vpop.f32.mrf.mxu0
    %v520 = vadd.f32 0.0, %v519
    %521 = vdwg.mxu0
    %522 = vmatpush.msra.mxu0 %v501
    %523 = vmatpush.msra.mxu0 %v499
    %524 = vmatpush.msra.mxu0 %v497
    %525 = vmatpush.msra.mxu0 %v495
    %526 = vmatpush.msra.mxu0 %v493
    %527 = vmatpush.msra.mxu0 %v491
    %528 = vmatpush.msra.mxu0 %v489
    %529 = vmatpush.msra.mxu0 %v487
    %530 = vmatpush.msra.mxu0 %v485
    %531 = vmatpush.msra.mxu0 %v483
    %532 = vmatpush.msra.mxu0 %v481
    %533 = vmatpush.msra.mxu0 %v479
    %534 = vmatpush.msra.mxu0 %v477
    %535 = vmatpush.msra.mxu0 %v475
    %536 = vmatpush.msra.mxu0 %v473
    %537 = vmatpush.msra.mxu0 %v471
    %538 = vmatmul.f32.gmra.mxu0 %v450
    %v539 = vpop.f32.mrf.mxu0
    %v540 = vadd.f32 0.0, %v539
    %541 = vdwg.mxu0
    %s542 = scalar_lea.vmem %s1, 4
    %v543 = vld [vmem:[%s542] ss:$8 sm:$0x3]
    %s544 = scalar_lea.vmem %s1, 17
    %v545 = vld [vmem:[%s544] ss:$8 sm:$0x3]
    %v546 = vrot.slane %v520, 4
    %v547 = vadd.f32 %v520, %v546
    %v548 = vrot.slane %v547, 2
    %v549 = vadd.f32 %v547, %v548
    %v550 = vrot.slane %v549, 1
    %v551 = vadd.f32 %v549, %v550
    %v552 = vrot.slane %v540, 4
    %v553 = vadd.f32 %v540, %v552
    %v554 = vrot.slane %v553, 2
    %v555 = vadd.f32 %v553, %v554
    %v556 = vrot.slane %v555, 1
    %v557 = vadd.f32 %v555, %v556
    %v558 = vmul.f32 %v551, 0.125
    %v559 = vmul.f32 %v557, 0.125
    %v560 = vsub.f32 %v520, %v558
    %v561 = vsub.f32 %v540, %v559
    %v562 = vmul.f32 %v560, %v560
    %v563 = vmul.f32 %v561, %v561
    %v564 = vrot.slane %v562, 4
    %v565 = vadd.f32 %v562, %v564
    %v566 = vrot.slane %v565, 2
    %v567 = vadd.f32 %v565, %v566
    %v568 = vrot.slane %v567, 1
    %v569 = vadd.f32 %v567, %v568
    %v570 = vrot.slane %v563, 4
    %v571 = vadd.f32 %v563, %v570
    %v572 = vrot.slane %v571, 2
    %v573 = vadd.f32 %v571, %v572
    %v574 = vrot.slane %v573, 1
    %v575 = vadd.f32 %v573, %v574
    %v576 = vmul.f32 %v569, 0.125
    %v577 = vmul.f32 %v575, 0.125
    %v578 = vadd.f32 %v576, 1e-05
    %v579 = vadd.f32 %v577, 1e-05
    %v580 = vrsqrt.pop %v578
    %v581 = vmul.f32 %v580, %v578
    %v582 = vmul.f32 %v581, %v580
    %v583 = vmul.f32 0.5, %v582
    %v584 = vsub.f32 1.5, %v583
    %v585 = vmul.f32 %v580, %v584
    %vm586 = vweird.f32 %v578
    %vm587 = vweird.f32 %v580
    %vm588 = vmor %vm586, %vm587
    %v589 = vsel %vm588, %v580, %v585
    %v590 = vrsqrt.pop %v579
    %v591 = vmul.f32 %v590, %v579
    %v592 = vmul.f32 %v591, %v590
    %v593 = vmul.f32 0.5, %v592
    %v594 = vsub.f32 1.5, %v593
    %v595 = vmul.f32 %v590, %v594
    %vm596 = vweird.f32 %v579
    %vm597 = vweird.f32 %v590
    %vm598 = vmor %vm596, %vm597
    %v599 = vsel %vm598, %v590, %v595
    %v602 = vrot.slane %v599, 7
    %vm603 = vcmask 1040384
    %v604 = vsel %vm603, %v589, %v602
    %v606 = vmul.f32 %v543, %v604
    %v608 = vperm.slane %v606, 0
    %v609 = vperm.slane %v606, 1
    %v612 = vmul.f32 %v560, %v608
    %v613 = vmul.f32 %v561, %v609
    %v615 = vperm.slane %v545, 0
    %v616 = vperm.slane %v545, 1
    %v619 = vadd.f32 %v612, %v615
    %v620 = vadd.f32 %v613, %v616
    %v621 = vmax.f32 %v619, 0.0
    %v622 = vmax.f32 %v620, 0.0
    %s623 = smul.u32 4, 32
    %s624 = smul.u32 %s623, 1
    %s625 = sshll.u32 %s624, 4
    %626 = dma.done %s42, %s625
    %v627 = vld [vmem:[#allocation4] sm:$0xf]
    %v628 = vld [vmem:[#allocation4 + $0x4] sm:$0xf]
    %v629 = vld [vmem:[#allocation4 + $0x8] sm:$0xf]
    %v630 = vld [vmem:[#allocation4 + $0xc] sm:$0xf]
    %v631 = vld [vmem:[#allocation4 + $0x10] sm:$0xf]
    %v632 = vld [vmem:[#allocation4 + $0x14] sm:$0xf]
    %v633 = vld [vmem:[#allocation4 + $0x18] sm:$0xf]
    %v634 = vld [vmem:[#allocation4 + $0x1c] sm:$0xf]
    %v635 = vld [vmem:[#allocation4 + $0x20] sm:$0xf]
    %v636 = vld [vmem:[#allocation4 + $0x24] sm:$0xf]
    %v637 = vld [vmem:[#allocation4 + $0x28] sm:$0xf]
    %v638 = vld [vmem:[#allocation4 + $0x2c] sm:$0xf]
    %v639 = vld [vmem:[#allocation4 + $0x30] sm:$0xf]
    %v640 = vld [vmem:[#allocation4 + $0x34] sm:$0xf]
    %v641 = vld [vmem:[#allocation4 + $0x38] sm:$0xf]
    %v642 = vld [vmem:[#allocation4 + $0x3c] sm:$0xf]
    %v643 = vld [vmem:[#allocation4 + $0x40] sm:$0xf]
    %v644 = vld [vmem:[#allocation4 + $0x44] sm:$0xf]
    %v645 = vld [vmem:[#allocation4 + $0x48] sm:$0xf]
    %v646 = vld [vmem:[#allocation4 + $0x4c] sm:$0xf]
    %v647 = vld [vmem:[#allocation4 + $0x50] sm:$0xf]
    %v648 = vld [vmem:[#allocation4 + $0x54] sm:$0xf]
    %v649 = vld [vmem:[#allocation4 + $0x58] sm:$0xf]
    %v650 = vld [vmem:[#allocation4 + $0x5c] sm:$0xf]
    %v651 = vld [vmem:[#allocation4 + $0x60] sm:$0xf]
    %v652 = vld [vmem:[#allocation4 + $0x64] sm:$0xf]
    %v653 = vld [vmem:[#allocation4 + $0x68] sm:$0xf]
    %v654 = vld [vmem:[#allocation4 + $0x6c] sm:$0xf]
    %v655 = vld [vmem:[#allocation4 + $0x70] sm:$0xf]
    %v656 = vld [vmem:[#allocation4 + $0x74] sm:$0xf]
    %v657 = vld [vmem:[#allocation4 + $0x78] sm:$0xf]
    %v658 = vld [vmem:[#allocation4 + $0x7c] sm:$0xf]
    %v659 = vunpack.c.l.bf16 %v627
    %v660 = vunpack.c.l.bf16 %v628
    %v661 = vunpack.c.l.bf16 %v629
    %v662 = vunpack.c.l.bf16 %v630
    %v663 = vunpack.c.l.bf16 %v631
    %v664 = vunpack.c.l.bf16 %v632
    %v665 = vunpack.c.l.bf16 %v633
    %v666 = vunpack.c.l.bf16 %v634
    %v667 = vunpack.c.l.bf16 %v635
    %v668 = vunpack.c.l.bf16 %v636
    %v669 = vunpack.c.l.bf16 %v637
    %v670 = vunpack.c.l.bf16 %v638
    %v671 = vunpack.c.l.bf16 %v639
    %v672 = vunpack.c.l.bf16 %v640
    %v673 = vunpack.c.l.bf16 %v641
    %v674 = vunpack.c.l.bf16 %v642
    %v675 = vunpack.c.l.bf16 %v643
    %v676 = vunpack.c.l.bf16 %v644
    %v677 = vunpack.c.l.bf16 %v645
    %v678 = vunpack.c.l.bf16 %v646
    %v679 = vunpack.c.l.bf16 %v647
    %v680 = vunpack.c.l.bf16 %v648
    %v681 = vunpack.c.l.bf16 %v649
    %v682 = vunpack.c.l.bf16 %v650
    %v683 = vunpack.c.l.bf16 %v651
    %v684 = vunpack.c.l.bf16 %v652
    %v685 = vunpack.c.l.bf16 %v653
    %v686 = vunpack.c.l.bf16 %v654
    %v687 = vunpack.c.l.bf16 %v655
    %v688 = vunpack.c.l.bf16 %v656
    %v689 = vunpack.c.l.bf16 %v657
    %v690 = vunpack.c.l.bf16 %v658
    %v691 = vld [vmem:[%s1 + $0x12] ss:$0 sm:$0xff]
    %692 = vmatpush.msra.mxu0 %v674
    %693 = vmatpush.msra.mxu0 %v673
    %694 = vmatpush.msra.mxu0 %v672
    %695 = vmatpush.msra.mxu0 %v671
    %696 = vmatpush.msra.mxu0 %v670
    %697 = vmatpush.msra.mxu0 %v669
    %698 = vmatpush.msra.mxu0 %v668
    %699 = vmatpush.msra.mxu0 %v667
    %700 = vmatpush.msra.mxu0 %v666
    %701 = vmatpush.msra.mxu0 %v665
    %702 = vmatpush.msra.mxu0 %v664
    %703 = vmatpush.msra.mxu0 %v663
    %704 = vmatpush.msra.mxu0 %v662
    %705 = vmatpush.msra.mxu0 %v661
    %706 = vmatpush.msra.mxu0 %v660
    %707 = vmatpush.msra.mxu0 %v659
    %708 = vmatmul.f32.gmra.mxu0 %v621
    %v709 = vpop.f32.mrf.mxu0
    %v710 = vadd.f32 %v691, %v709
    %711 = vdwg.mxu0
    %712 = vmatpush.msra.mxu0 %v690
    %713 = vmatpush.msra.mxu0 %v689
    %714 = vmatpush.msra.mxu0 %v688
    %715 = vmatpush.msra.mxu0 %v687
    %716 = vmatpush.msra.mxu0 %v686
    %717 = vmatpush.msra.mxu0 %v685
    %718 = vmatpush.msra.mxu0 %v684
    %719 = vmatpush.msra.mxu0 %v683
    %720 = vmatpush.msra.mxu0 %v682
    %721 = vmatpush.msra.mxu0 %v681
    %722 = vmatpush.msra.mxu0 %v680
    %723 = vmatpush.msra.mxu0 %v679
    %724 = vmatpush.msra.mxu0 %v678
    %725 = vmatpush.msra.mxu0 %v677
    %726 = vmatpush.msra.mxu0 %v676
    %727 = vmatpush.msra.mxu0 %v675
    %728 = vmatmul.f32.gmra.mxu0 %v622
    %v729 = vpop.f32.mrf.mxu0
    %v730 = vadd.f32 %v710, %v729
    %731 = vdwg.mxu0
    %732 = vst [vmem:[#allocation6] sm:$0xff] %v730
    // Predicated region
    $region34: #{decoder_forward.1} parent=1 // pred_check
      _
    $region35: #{decoder_forward.1} parent=1 // pred_check_branch
      %734 = sbr.rel (0) target = $region37
    $region36: #{decoder_forward.1} parent=1 // pred_region
      %736 = vsyncadd [#allocation7], 0
      %s738 = sshll.u32 [#allocation6], 4
      %s739 = int_to_ptr.vmem [resolvable:$true] %s738
      %s740 = sshll.u32 %s5, 4
      %s741 = int_to_ptr.hbm [resolvable:$true] %s740
      %743 = dma.vmem_to_hbm [thread:$0]  %s739, 128, %s741, [#allocation7]
    $region37: #{decoder_forward.1} parent=1 // pred_fallthru
      _
    // Predicated region
    $region38: #{decoder_forward.1} parent=1 // pred_check
      _
    $region39: #{decoder_forward.1} parent=1 // pred_check_branch
      %745 = sbr.rel (0) target = $region41
    $region40: #{decoder_forward.1} parent=1 // pred_region
      %747 = dma.done [#allocation7], 128
    $region41: #{decoder_forward.1} parent=1 // pred_fallthru
      _
    %748 = vsyncpa [#allocation7], 1
  %749 = vsyncmov [#allocation5]
  %s750 = vpop.sfrf %749
  %p751 = scmp.eq.s32.totalorder %s750, 0
  %p752 = pneg %p751
  %754 = shalt.err (%p752)
  %s755 = scalar_lea.sflag [#allocation5], 1
  %756 = vsyncmov %s755
  %s757 = vpop.sfrf %756
  %p758 = scmp.eq.s32.totalorder %s757, 0
  %p759 = pneg %p758
  %761 = shalt.err (%p759)
  %s762 = scalar_lea.sflag [#allocation5], 2
  %763 = vsyncmov %s762
  %s764 = vpop.sfrf %763
  %p765 = scmp.eq.s32.totalorder %s764, 0
  %p766 = pneg %p765
  %768 = shalt.err (%p766)
  %s769 = scalar_lea.sflag [#allocation5], 3
  %770 = vsyncmov %s769
  %s771 = vpop.sfrf %770
  %p772 = scmp.eq.s32.totalorder %s771, 0
  %p773 = pneg %p772
  %775 = shalt.err (%p773)

</llo_original>
